<compile_context>
chip_gen: v5e
topology: v5e:2x2
jax: 0.10.0
libtpu: 0.0.40
codegen_flags: <defaults>
</compile_context>

<pallas_src>
import functools

import jax
import jax.numpy as jnp
from jax.experimental import pallas as pl
from jax.experimental.pallas import tpu as pltpu

BN_EPS = 1e-5
LEAKY_SLOPE = 0.01
_VMEM_LIMIT = 48 * 1024 * 1024  # safe on v5e/v6e (128 MiB phys) and v7x (64 MiB phys)


# --------------------------------------------------------------------------- #
# Pass 1: per-tile partial sum / sum-of-squares of h = z @ W1 (batch-stat BN). #
# Each grid step writes its own (8, H) partial block -> axis is "parallel".    #
# --------------------------------------------------------------------------- #
def bn_stats_kernel(z_ref, w1_ref, sum_ref, sumsq_ref):
    # z streamed as f32; cast to bf16 in-kernel (free under the DMA).
    zb = z_ref[...].astype(jnp.bfloat16)
    h = jnp.dot(zb, w1_ref[...], preferred_element_type=jnp.float32)
    tile, h_dim = h.shape
    # Partial-reduce to 8 sublane rows so the output block stays (8,128)-aligned;
    # the final reduction over all rows happens in JAX (tiny).
    sum_ref[...] = jnp.sum(h.reshape(tile // 8, 8, h_dim), axis=0)
    sumsq_ref[...] = jnp.sum((h * h).reshape(tile // 8, 8, h_dim), axis=0)


# --------------------------------------------------------------------------- #
# Pass 2: in-kernel BN fold + LeakyReLU + second Linear + final ReLU.          #
# --------------------------------------------------------------------------- #
def decoder_kernel(z_ref, w1_ref, s_ref, ss_ref, gamma_ref, beta_ref,
                   w2_ref, b2_ref, o_ref, *, inv_n):
    # Linear #1 (b1 omitted: it cancels exactly under batch-stat BN).
    zb = z_ref[...].astype(jnp.bfloat16)
    h = jnp.dot(zb, w1_ref[...], preferred_element_type=jnp.float32)

    # Fold BN (batch stats + affine) into one per-feature scale/shift, in-kernel.
    mean = s_ref[...] * inv_n
    var = jnp.maximum(ss_ref[...] * inv_n - mean * mean, 0.0)   # guard cancellation
    scale = gamma_ref[...] * jax.lax.rsqrt(var + BN_EPS)        # EUP, free slack
    shift = beta_ref[...] - mean * scale
    h = h * scale + shift

    # LeakyReLU (Dropout == identity in eval mode).
    h = jnp.where(h > 0, h, LEAKY_SLOPE * h)

    # Linear #2 (bf16 MXU, f32 accumulate) + final ReLU.
    feat = jnp.dot(h.astype(jnp.bfloat16), w2_ref[...],
                   preferred_element_type=jnp.float32) + b2_ref[...]
    o_ref[...] = jnp.maximum(feat, 0.0).astype(o_ref.dtype)


def _tiling(n, target):
    """Tile = min(target, n) rounded up to a multiple of 16 (bf16 sublane packing).
    N is padded with zero rows to a tile multiple — zero rows are stats-safe."""
    tile = max(16, min(int(target), n))
    tile = ((tile + 15) // 16) * 16
    num_tiles = -(-n // tile)            # ceil div
    return tile, num_tiles, num_tiles * tile


def mlp_decoder(z, w1, b1, gamma, beta, w2, b2, *, tile_n=1024,
                out_dtype=jnp.float32):
    """z: (N, out_dim[1])  ->  returns (N, in_dim) in out_dtype (default f32)."""
    del b1  # cancels exactly under batch-statistics BatchNorm
    n, d_in = z.shape
    h_dim = w1.shape[1]
    d_out = w2.shape[1]

    tile, num_tiles, n_pad = _tiling(n, tile_n)
    if n_pad != n:
        z = jnp.pad(z, ((0, n_pad - n), (0, 0)))   # zero rows: 0 to sum/sumsq

    # Tiny resident weights cast once in the wrapper (negligible traffic).
    w1b = w1.astype(jnp.bfloat16)
    w2b = w2.astype(jnp.bfloat16)

    # ---------------- Pass 1: per-tile BN batch statistics (megacore-parallel) ----
    stats_cost = pl.CostEstimate(
        flops=2 * n_pad * d_in * h_dim + 4 * n_pad * h_dim,
        transcendentals=0,
        bytes_accessed=(n_pad * d_in * 4 + d_in * h_dim * 2
                        + 2 * 8 * num_tiles * h_dim * 4),
    )
    part_s, part_ss = pl.pallas_call(
        bn_stats_kernel,
        out_shape=(jax.ShapeDtypeStruct((8 * num_tiles, h_dim), jnp.float32),
                   jax.ShapeDtypeStruct((8 * num_tiles, h_dim), jnp.float32)),
        grid=(num_tiles,),
        in_specs=[
            pl.BlockSpec((tile, d_in), lambda i: (i, 0)),     # z tile (streamed, f32)
            pl.BlockSpec((d_in, h_dim), lambda i: (0, 0)),    # W1 (resident, bf16)
        ],
        out_specs=(
            pl.BlockSpec((8, h_dim), lambda i: (i, 0)),       # per-tile partial sum
            pl.BlockSpec((8, h_dim), lambda i: (i, 0)),       # per-tile partial sumsq
        ),
        compiler_params=pltpu.CompilerParams(
            dimension_semantics=("parallel",), vmem_limit_bytes=_VMEM_LIMIT),
        cost_estimate=stats_cost,
    )(z, w1b)

    # Tiny (8*num_tiles, H) reduction; scale/shift fold happens inside pass 2.
    s = jnp.sum(part_s, axis=0, keepdims=True)
    ss = jnp.sum(part_ss, axis=0, keepdims=True)

    # ---------------- Pass 2: BN fold + activations + second Linear ---------------
    out_bytes = jnp.dtype(out_dtype).itemsize
    main_cost = pl.CostEstimate(
        flops=(2 * n_pad * d_in * h_dim + 2 * n_pad * h_dim * d_out
               + 6 * n_pad * h_dim + 2 * n_pad * d_out),
        transcendentals=num_tiles * h_dim,
        bytes_accessed=(n_pad * d_in * 4 + d_in * h_dim * 2 + h_dim * d_out * 2
                        + 4 * h_dim * 4 + d_out * 4 + n_pad * d_out * out_bytes),
    )
    out = pl.pallas_call(
        functools.partial(decoder_kernel, inv_n=1.0 / n),
        out_shape=jax.ShapeDtypeStruct((n_pad, d_out), out_dtype),
        grid=(num_tiles,),
        in_specs=[
            pl.BlockSpec((tile, d_in), lambda i: (i, 0)),     # z tile (streamed, f32)
            pl.BlockSpec((d_in, h_dim), lambda i: (0, 0)),    # W1 (resident)
            pl.BlockSpec((1, h_dim), lambda i: (0, 0)),       # sum(h)
            pl.BlockSpec((1, h_dim), lambda i: (0, 0)),       # sum(h^2)
            pl.BlockSpec((1, h_dim), lambda i: (0, 0)),       # gamma
            pl.BlockSpec((1, h_dim), lambda i: (0, 0)),       # beta
            pl.BlockSpec((h_dim, d_out), lambda i: (0, 0)),   # W2 (resident)
            pl.BlockSpec((1, d_out), lambda i: (0, 0)),       # b2 (resident)
        ],
        out_specs=pl.BlockSpec((tile, d_out), lambda i: (i, 0)),
        compiler_params=pltpu.CompilerParams(
            dimension_semantics=("parallel",), vmem_limit_bytes=_VMEM_LIMIT),
        cost_estimate=main_cost,
    )(z, w1b, s, ss, gamma, beta, w2b, b2)

    return out[:n] if n_pad != n else out


# --------------------------------------------------------------------------- #
# Pure-JAX references for sanity checking.                                     #
# --------------------------------------------------------------------------- #
def mlp_decoder_ref_f32(z, w1, b1, gamma, beta, w2, b2):
    """Full-precision PyTorch-equivalent reference."""
    h = z @ w1 + b1
    mean = jnp.mean(h, axis=0, keepdims=True)
    var = jnp.mean((h - mean) ** 2, axis=0, keepdims=True)
    h = (h - mean) / jnp.sqrt(var + BN_EPS) * gamma + beta
    h = jnp.where(h > 0, h, LEAKY_SLOPE * h)
    feat = h @ w2 + b2
    return jnp.maximum(feat, 0.0)


def mlp_decoder_ref_matched(z, w1, gamma, beta, w2, b2):
    """Reference matching the kernel's numerics (bf16 matmul inputs, f32 stats)."""
    zb = z.astype(jnp.bfloat16)
    h = jnp.dot(zb, w1.astype(jnp.bfloat16), preferred_element_type=jnp.float32)
    n = z.shape[0]
    mean = jnp.sum(h, axis=0, keepdims=True) / n
    var = jnp.maximum(jnp.sum(h * h, axis=0, keepdims=True) / n - mean * mean, 0.0)
    scale = gamma * jax.lax.rsqrt(var + BN_EPS)
    shift = beta - mean * scale
    h = h * scale + shift
    h = jnp.where(h > 0, h, LEAKY_SLOPE * h)
    feat = jnp.dot(h.astype(jnp.bfloat16), w2.astype(jnp.bfloat16),
                   preferred_element_type=jnp.float32) + b2
    return jnp.maximum(feat, 0.0)


if __name__ == "__main__":
    # Shapes consistent with the module: in_dim = 384, out_dim = [256, 128].
    # batch = 250 with tile_n = 128 exercises the N-grid (2 tiles), the zero-row
    # padding path (250 -> 256), and the per-tile partial-stats reduction.
    in_dim = 384
    out_dim = [256, 128]
    batch = 250
    tile_n = 128

    key = jax.random.PRNGKey(0)
    kz, kw1, kb1, kg, kbt, kw2, kb2 = jax.random.split(key, 7)

    z = jax.random.normal(kz, (batch, out_dim[1]), dtype=jnp.float32)

    # Linear weights stored transposed as (in_features, out_features).
    w1 = jax.random.normal(kw1, (out_dim[1], out_dim[0]), dtype=jnp.float32) * 0.05
    b1 = jax.random.normal(kb1, (1, out_dim[0]), dtype=jnp.float32) * 0.05
    gamma = 1.0 + 0.1 * jax.random.normal(kg, (1, out_dim[0]), dtype=jnp.float32)
    beta = 0.1 * jax.random.normal(kbt, (1, out_dim[0]), dtype=jnp.float32)
    w2 = jax.random.normal(kw2, (out_dim[0], in_dim), dtype=jnp.float32) * 0.05
    b2 = jax.random.normal(kb2, (1, in_dim), dtype=jnp.float32) * 0.05

    out = mlp_decoder(z, w1, b1, gamma, beta, w2, b2, tile_n=tile_n)
    out = jax.block_until_ready(out)
    assert out.shape == (batch, in_dim)

    # Tight check against a reference with identical numerics (proves kernel math).
    ref_m = mlp_decoder_ref_matched(z, w1, gamma, beta, w2, b2)
    assert jnp.allclose(out, ref_m, atol=5e-3, rtol=5e-3), "mismatch vs matched reference"

    # Loose check against the full-f32 PyTorch-equivalent reference (bf16 MXU error).
    ref_f = mlp_decoder_ref_f32(z, w1, b1, gamma, beta, w2, b2)
    assert jnp.allclose(out, ref_f, atol=1e-1, rtol=1e-1), "mismatch vs f32 reference"

    print("KERNEL_OK")
</pallas_src>

<mosaic_0001>
module attributes {stable_mosaic.version = 11 : i64} {
  func.func @bn_stats_kernel(%arg0: i32, %arg1: memref<128x128xf32, #tpu.memory_space<vmem>>, %arg2: memref<128x256xbf16, #tpu.memory_space<vmem>>, %arg3: memref<8x256xf32, #tpu.memory_space<vmem>>, %arg4: memref<8x256xf32, #tpu.memory_space<vmem>>) attributes {dimension_semantics = [#tpu.dimension_semantics<parallel>], iteration_bounds = array<i64: 2>, scalar_prefetch = 0 : i64, scratch_operands = 0 : i64, tpu.core_type = #tpu.core_type<tc>, window_params = [{transform_indices = @transform_0, window_bounds = array<i64: 128, 128>}, {pipeline_mode = #tpu.pipeline_mode<synchronous>, transform_indices = @transform_1, window_bounds = array<i64: 128, 256>}, {transform_indices = @transform_2, window_bounds = array<i64: 8, 256>}, {transform_indices = @transform_3, window_bounds = array<i64: 8, 256>}]} {
    %c0 = arith.constant 0 : index
    %c0_0 = arith.constant 0 : index
    %0 = vector.load %arg1[%c0, %c0_0] : memref<128x128xf32, #tpu.memory_space<vmem>>, vector<128x128xf32>
    %1 = arith.truncf %0 : vector<128x128xf32> to vector<128x128xbf16>
    %c0_1 = arith.constant 0 : index
    %c0_2 = arith.constant 0 : index
    %2 = vector.load %arg2[%c0_1, %c0_2] : memref<128x256xbf16, #tpu.memory_space<vmem>>, vector<128x256xbf16>
    %cst = arith.constant dense<0.000000e+00> : vector<128x256xf32>
    %3 = tpu.matmul %1, %2, %cst {dimension_numbers = #tpu.dot_dimension_numbers<[1], [0], [0], [1], [0, 0, 1, 1], [], []>} : vector<128x128xbf16>, vector<128x256xbf16>, vector<128x256xf32> -> vector<128x256xf32>
    %4 = vector.shape_cast %3 : vector<128x256xf32> to vector<16x8x256xf32>
    %cst_3 = arith.constant dense<0.000000e+00> : vector<8x256xf32>
    %5 = vector.multi_reduction <add>, %4, %cst_3 [0] : vector<16x8x256xf32> to vector<8x256xf32>
    %c0_4 = arith.constant 0 : index
    %c0_5 = arith.constant 0 : index
    %6 = vector.load %arg3[%c0_4, %c0_5] : memref<8x256xf32, #tpu.memory_space<vmem>>, vector<8x256xf32>
    tpu.vector_store %arg3[%c0_4, %c0_5], %5 {strides = array<i32>} : memref<8x256xf32, #tpu.memory_space<vmem>>, vector<8x256xf32>,
    %7 = arith.mulf %3, %3 : vector<128x256xf32>
    %8 = vector.shape_cast %7 : vector<128x256xf32> to vector<16x8x256xf32>
    %cst_6 = arith.constant dense<0.000000e+00> : vector<8x256xf32>
    %9 = vector.multi_reduction <add>, %8, %cst_6 [0] : vector<16x8x256xf32> to vector<8x256xf32>
    %c0_7 = arith.constant 0 : index
    %c0_8 = arith.constant 0 : index
    %10 = vector.load %arg4[%c0_7, %c0_8] : memref<8x256xf32, #tpu.memory_space<vmem>>, vector<8x256xf32>
    tpu.vector_store %arg4[%c0_7, %c0_8], %9 {strides = array<i32>} : memref<8x256xf32, #tpu.memory_space<vmem>>, vector<8x256xf32>,
    return
  }
  func.func @transform_0(%arg0: i32) -> (i32, i32) {
    %c0_i32 = arith.constant 0 : i32
    %c0_i32_0 = arith.constant 0 : i32
    return %arg0, %c0_i32 : i32, i32
  }
  func.func @transform_1(%arg0: i32) -> (i32, i32) {
    %c0_i32 = arith.constant 0 : i32
    %c0_i32_0 = arith.constant 0 : i32
    %c0_i32_1 = arith.constant 0 : i32
    return %c0_i32, %c0_i32_0 : i32, i32
  }
  func.func @transform_2(%arg0: i32) -> (i32, i32) {
    %c0_i32 = arith.constant 0 : i32
    %c0_i32_0 = arith.constant 0 : i32
    return %arg0, %c0_i32 : i32, i32
  }
  func.func @transform_3(%arg0: i32) -> (i32, i32) {
    %c0_i32 = arith.constant 0 : i32
    %c0_i32_0 = arith.constant 0 : i32
    return %arg0, %c0_i32 : i32, i32
  }
}

</mosaic_0001>

<llo_original>
// kernel: tpu_custom_call.1
$region0: #{tpu_custom_call.1}
  #allocation0 [shape = 'u32[]', space=smem, size = 0x4, offset = 0x4, fixed_abs, tag = 'smem constant byte address 0x4 - core index']
  #allocation1 [shape = 'u32[72,128]{1,0:T(1,128)}', space=vmem, size = 0x9000, scoped, tag = 'internal scratch']
  %s0 = inlined_call_operand.hbm [shape: f32[256,128], index: 0, kind: input, shape index: {}]
  %s1 = inlined_call_operand.hbm [shape: bf16[128,256], index: 1, kind: input, shape index: {}]
  %s2 = inlined_call_operand.hbm [shape: f32[16,256], index: 2, kind: output, shape index: {0}]
  %s3 = inlined_call_operand.hbm [shape: f32[16,256], index: 3, kind: output, shape index: {1}]
  %4 = xla_tuple %s2, %s3
  %s5 = sld [smem:[#allocation0]]
  $region57: #{tpu_custom_call.1} parent=0
    _
  %s7 = ssub.s32 1, %s5
  %s8 = scalar_select 0, %s7, %s5
  $region1: #{tpu_custom_call.1} parent=0
    #allocation2 [shape = 'u8[131072]{0}', space=vmem, size = 0x20000, scoped, tag = 'input window, operand 0']
    #allocation3 [shape = 's32[2]{0}', space=sflag, size = 0x8, scoped, tag = 'scoped memory for tpu_custom_call.1']
    #allocation4 [shape = 's32[2]{0}', space=sflag, size = 0x8, scoped, tag = 'scoped memory for tpu_custom_call.1']
    #allocation5 [shape = 'u8[65536]{0}', space=vmem, size = 0x10000, scoped, tag = 'input window, operand 1, single buffered']
    #allocation6 [shape = 's32[1]{0}', space=sflag, size = 0x4, scoped, tag = 'scoped memory for tpu_custom_call.1']
    #allocation7 [shape = 'u8[16384]{0}', space=vmem, size = 0x4000, scoped, tag = 'output window, operand 0']
    #allocation8 [shape = 'u8[16384]{0}', space=vmem, size = 0x4000, scoped, tag = 'output window, operand 1']
    #allocation9 [shape = 's32[2]{0}', space=sflag, size = 0x8, scoped, tag = 'scoped memory for tpu_custom_call.1']
    %9 = vsyncpa [#allocation3], 0
    %s10 = scalar_lea.sflag [#allocation3], 1
    %11 = vsyncpa %s10, 0
    %12 = vsyncpa [#allocation6], 0
    %13 = vsyncpa [#allocation4], 0
    %s14 = scalar_lea.sflag [#allocation4], 1
    %15 = vsyncpa %s14, 0
    %16 = vsyncpa [#allocation9], 0
    %s17 = scalar_lea.sflag [#allocation9], 1
    %18 = vsyncpa %s17, 0
    loop: start=0, step=1, limit=4
    $region2: #{tpu_custom_call.1} parent=1 // loop_pre_header
      _
    $region3: #{tpu_custom_call.1} parent=1 // loop_header
      %s20 = sphi 0, %s24
      %p21 = scmp.ge.s32.totalorder %s20, 4
      %s30 = sphi 0, %s32
      %s33 = sphi 0, %s30
      %s34 = sphi 0, %s33
      %s50 = sphi 0, %s34
      %s54 = sphi 0, %s54
      %s56 = sphi 0, %s54
      %s57 = sphi 0, %s56
      %s71 = sphi 0, %s57
      %s77 = sphi 0, %s79
      %s80 = sphi 0, %s77
      %s81 = sphi 0, %s80
      %s97 = sphi 0, %s81
      %s103 = sphi 0, %s105
      %s106 = sphi 0, %s103
      %s107 = sphi 0, %s106
      %s123 = sphi 0, %s107
    $region4: #{tpu_custom_call.1} parent=1 // loop_header_branch
      %23 = sbr.rel (%p21) target = $region8
    $region5: #{tpu_custom_call.1} parent=1 // loop_body
      %s25 = ssub.s32 %s20, 1
      %s26 = ssub.s32 %s20, 2
      %s27 = sadd.s32 %s20, 1
      %s28 = ssub.s32 %s20, %s27
      %p29 = scmp.eq.s32.totalorder %s28, 0
      %s31 = sadd.s32 %s30, 1
      %s32 = scalar_select %p29, %s30, %s31
      %p35 = pneg %p29
      %p36 = scmp.eq.s32.totalorder %s20, 1
      %p37 = por %p35, %p36
      %p38 = scmp.ne.s32.totalorder %s30, %s33
      %p39 = scmp.eq.s32.totalorder %s20, 0
      %p40 = por %p38, %p39
      %p41 = scmp.ne.s32.totalorder %s30, %s33
      %p42 = scmp.eq.s32.totalorder %s25, 1
      %p43 = por %p41, %p42
      %p44 = scmp.ne.s32.totalorder %s33, %s34
      %p45 = scmp.eq.s32.totalorder %s25, 0
      %p46 = por %p44, %p45
      %p47 = scmp.ne.s32.totalorder %s33, %s34
      %p48 = scmp.eq.s32.totalorder %s26, 1
      %p49 = por %p47, %p48
      %p51 = scmp.ne.s32.totalorder %s34, %s50
      %p52 = scmp.eq.s32.totalorder %s26, 0
      %p53 = por %p51, %p52
      %s55 = sadd.s32 %s54, 1
      %p58 = scmp.eq.s32.totalorder %s20, 1
      %p59 = scmp.ne.s32.totalorder %s54, %s56
      %p60 = scmp.eq.s32.totalorder %s20, 0
      %p61 = por %p59, %p60
      %p62 = scmp.ne.s32.totalorder %s54, %s56
      %p63 = scmp.eq.s32.totalorder %s25, 1
      %p64 = por %p62, %p63
      %p65 = scmp.ne.s32.totalorder %s56, %s57
      %p66 = scmp.eq.s32.totalorder %s25, 0
      %p67 = por %p65, %p66
      %p68 = scmp.ne.s32.totalorder %s56, %s57
      %p69 = scmp.eq.s32.totalorder %s26, 1
      %p70 = por %p68, %p69
      %p72 = scmp.ne.s32.totalorder %s57, %s71
      %p73 = scmp.eq.s32.totalorder %s26, 0
      %p74 = por %p72, %p73
      %s75 = ssub.s32 %s20, %s27
      %p76 = scmp.eq.s32.totalorder %s75, 0
      %s78 = sadd.s32 %s77, 1
      %s79 = scalar_select %p76, %s77, %s78
      %p82 = pneg %p76
      %p83 = scmp.eq.s32.totalorder %s20, 1
      %p84 = por %p82, %p83
      %p85 = scmp.ne.s32.totalorder %s77, %s80
      %p86 = scmp.eq.s32.totalorder %s20, 0
      %p87 = por %p85, %p86
      %p88 = scmp.ne.s32.totalorder %s77, %s80
      %p89 = scmp.eq.s32.totalorder %s25, 1
      %p90 = por %p88, %p89
      %p91 = scmp.ne.s32.totalorder %s80, %s81
      %p92 = scmp.eq.s32.totalorder %s25, 0
      %p93 = por %p91, %p92
      %p94 = scmp.ne.s32.totalorder %s80, %s81
      %p95 = scmp.eq.s32.totalorder %s26, 1
      %p96 = por %p94, %p95
      %p98 = scmp.ne.s32.totalorder %s81, %s97
      %p99 = scmp.eq.s32.totalorder %s26, 0
      %p100 = por %p98, %p99
      %s101 = ssub.s32 %s20, %s27
      %p102 = scmp.eq.s32.totalorder %s101, 0
      %s104 = sadd.s32 %s103, 1
      %s105 = scalar_select %p102, %s103, %s104
      %p108 = pneg %p102
      %p109 = scmp.eq.s32.totalorder %s20, 1
      %p110 = por %p108, %p109
      %p111 = scmp.ne.s32.totalorder %s103, %s106
      %p112 = scmp.eq.s32.totalorder %s20, 0
      %p113 = por %p111, %p112
      %p114 = scmp.ne.s32.totalorder %s103, %s106
      %p115 = scmp.eq.s32.totalorder %s25, 1
      %p116 = por %p114, %p115
      %p117 = scmp.ne.s32.totalorder %s106, %s107
      %p118 = scmp.eq.s32.totalorder %s25, 0
      %p119 = por %p117, %p118
      %p120 = scmp.ne.s32.totalorder %s106, %s107
      %p121 = scmp.eq.s32.totalorder %s26, 1
      %p122 = por %p120, %p121
      %p124 = scmp.ne.s32.totalorder %s107, %s123
      %p125 = scmp.eq.s32.totalorder %s26, 0
      %p126 = por %p124, %p125
      %p127 = scmp.le.s32.totalorder 1, %s20
      %p128 = scmp.lt.s32.totalorder %s20, 3
      %p129 = pnand %p127, %p128
      %p130 = pneg %p129
      // Predicated region
      $region9: #{tpu_custom_call.1} parent=5 // pred_check
        _
      $region10: #{tpu_custom_call.1} parent=5 // pred_check_branch
        %132 = sbr.rel (%p129) target = $region12
      $region11: #{tpu_custom_call.1} parent=5 // pred_region
        %s133 = ssub.s32 %s20, 1
        // Predicated region
        $region13: #{tpu_custom_call.1} parent=11 // pred_check
          %p134 = pneg %p67
        $region14: #{tpu_custom_call.1} parent=11 // pred_check_branch
          %136 = sbr.rel (%p134) target = $region16
        $region15: #{tpu_custom_call.1} parent=11 // pred_region
          %138 = vsyncadd [#allocation6], 0
          %s139 = sshll.u32 %s1, 4
          %s140 = int_to_ptr.hbm [resolvable:$true] %s139
          %s141 = sshll.u32 [#allocation5], 4
          %s142 = int_to_ptr.vmem [resolvable:$true] %s141
          %147 = dma.hbm_to_vmem [thread:$0]  %s140, 2048, %s142, [#allocation6], 128, 128, 8
        $region16: #{tpu_custom_call.1} parent=11 // pred_fallthru
          _
      $region12: #{tpu_custom_call.1} parent=5 // pred_fallthru
        _
      %p148 = scmp.lt.s32.totalorder %s20, 2
      // Predicated region
      $region17: #{tpu_custom_call.1} parent=5 // pred_check
        %p149 = pneg %p148
      $region18: #{tpu_custom_call.1} parent=5 // pred_check_branch
        %151 = sbr.rel (%p149) target = $region20
      $region19: #{tpu_custom_call.1} parent=5 // pred_region
        // Predicated region
        $region21: #{tpu_custom_call.1} parent=19 // pred_check
          %p152 = pneg %p40
        $region22: #{tpu_custom_call.1} parent=19 // pred_check_branch
          %154 = sbr.rel (%p152) target = $region24
        $region23: #{tpu_custom_call.1} parent=19 // pred_region
          %s155 = sand.u32 %s30, 1
          %s156 = scalar_lea.sflag [#allocation3], %s155
          %s157 = sand.u32 %s30, 1
          %s158 = smul.addr %s157, 128
          %s159 = scalar_lea.vmem [#allocation2], %s158
          %s160 = smul.u32 16, %s20
          %162 = vsyncadd %s156, 0
          %s163 = smul.addr %s160, 8
          %s164 = scalar_lea.hbm %s0, %s163
          %s165 = sshll.u32 %s164, 4
          %s166 = int_to_ptr.hbm [resolvable:$true] %s165
          %s167 = sshll.u32 %s159, 4
          %s168 = int_to_ptr.vmem [resolvable:$true] %s167
          %173 = dma.hbm_to_vmem [thread:$0]  %s166, 2048, %s168, %s156, 128, 128, 8
        $region24: #{tpu_custom_call.1} parent=19 // pred_fallthru
          _
      $region20: #{tpu_custom_call.1} parent=5 // pred_fallthru
        _
      %p174 = scmp.le.s32.totalorder 1, %s20
      %p175 = scmp.lt.s32.totalorder %s20, 3
      %p176 = pnand %p174, %p175
      %p177 = pneg %p176
      // Predicated region
      $region25: #{tpu_custom_call.1} parent=5 // pred_check
        _
      $region26: #{tpu_custom_call.1} parent=5 // pred_check_branch
        %179 = sbr.rel (%p176) target = $region28
      $region27: #{tpu_custom_call.1} parent=5 // pred_region
        %s180 = ssub.s32 %s20, 1
        %s181 = sand.u32 %s33, 1
        %s182 = scalar_lea.sflag [#allocation3], %s181
        %s183 = sand.u32 %s33, 1
        %s184 = smul.addr %s183, 128
        %s185 = scalar_lea.vmem [#allocation2], %s184
        // Predicated region
        $region29: #{tpu_custom_call.1} parent=27 // pred_check
          %p186 = pneg %p46
        $region30: #{tpu_custom_call.1} parent=27 // pred_check_branch
          %188 = sbr.rel (%p186) target = $region32
        $region31: #{tpu_custom_call.1} parent=27 // pred_region
          %190 = dma.done %s182, 2048
        $region32: #{tpu_custom_call.1} parent=27 // pred_fallthru
          _
        // Predicated region
        $region33: #{tpu_custom_call.1} parent=27 // pred_check
          %p191 = pneg %p67
        $region34: #{tpu_custom_call.1} parent=27 // pred_check_branch
          %193 = sbr.rel (%p191) target = $region36
        $region35: #{tpu_custom_call.1} parent=27 // pred_region
          %195 = dma.done [#allocation6], 2048
        $region36: #{tpu_custom_call.1} parent=27 // pred_fallthru
          _
        %s196 = sand.u32 %s33, 1
        %s197 = scalar_lea.sflag [#allocation3], %s196
        %s198 = sand.u32 %s33, 1
        %s199 = smul.addr %s198, 128
        %s200 = scalar_lea.vmem [#allocation2], %s199
        %p201 = pneg %p46
        %p202 = pneg %p43
        %p203 = pneg %p67
        %p204 = pneg %p64
        %p205 = pneg %p93
        %p206 = pneg %p90
        %s207 = sand.u32 %s80, 1
        %s208 = scalar_lea.sflag [#allocation4], %s207
        %s209 = sand.u32 %s80, 1
        %s210 = smul.addr %s209, 16
        %s211 = scalar_lea.vmem [#allocation7], %s210
        %p212 = pneg %p119
        %p213 = pneg %p116
        %s214 = sand.u32 %s106, 1
        %s215 = scalar_lea.sflag [#allocation9], %s214
        %s216 = sand.u32 %s106, 1
        %s217 = smul.addr %s216, 16
        %s218 = scalar_lea.vmem [#allocation8], %s217
        %s219 = smul.u32 16, %s25
        %v220 = vld [vmem:[%s185] sm:$0xff]
        %v221 = vld [vmem:[%s185 + $0x8] sm:$0xff]
        %v222 = vld [vmem:[%s185 + $0x10] sm:$0xff]
        %v223 = vld [vmem:[%s185 + $0x18] sm:$0xff]
        %v224 = vld [vmem:[%s185 + $0x20] sm:$0xff]
        %v225 = vld [vmem:[%s185 + $0x28] sm:$0xff]
        %v226 = vld [vmem:[%s185 + $0x30] sm:$0xff]
        %v227 = vld [vmem:[%s185 + $0x38] sm:$0xff]
        %v228 = vld [vmem:[%s185 + $0x40] sm:$0xff]
        %v229 = vld [vmem:[%s185 + $0x48] sm:$0xff]
        %v230 = vld [vmem:[%s185 + $0x50] sm:$0xff]
        %v231 = vld [vmem:[%s185 + $0x58] sm:$0xff]
        %v232 = vld [vmem:[%s185 + $0x60] sm:$0xff]
        %v233 = vld [vmem:[%s185 + $0x68] sm:$0xff]
        %v234 = vld [vmem:[%s185 + $0x70] sm:$0xff]
        %v235 = vld [vmem:[%s185 + $0x78] sm:$0xff]
        %v236 = vpack.c.bf16 %v221, %v220
        %v237 = vpack.c.bf16 %v223, %v222
        %v238 = vpack.c.bf16 %v225, %v224
        %v239 = vpack.c.bf16 %v227, %v226
        %v240 = vpack.c.bf16 %v229, %v228
        %v241 = vpack.c.bf16 %v231, %v230
        %v242 = vpack.c.bf16 %v233, %v232
        %v243 = vpack.c.bf16 %v235, %v234
        %v244 = vld [vmem:[#allocation5] sm:$0xff]
        %v245 = vld [vmem:[#allocation5 + $0x8] sm:$0xff]
        %v246 = vld [vmem:[#allocation5 + $0x10] sm:$0xff]
        %v247 = vld [vmem:[#allocation5 + $0x18] sm:$0xff]
        %v248 = vld [vmem:[#allocation5 + $0x20] sm:$0xff]
        %v249 = vld [vmem:[#allocation5 + $0x28] sm:$0xff]
        %v250 = vld [vmem:[#allocation5 + $0x30] sm:$0xff]
        %v251 = vld [vmem:[#allocation5 + $0x38] sm:$0xff]
        %v252 = vld [vmem:[#allocation5 + $0x40] sm:$0xff]
        %v253 = vld [vmem:[#allocation5 + $0x48] sm:$0xff]
        %v254 = vld [vmem:[#allocation5 + $0x50] sm:$0xff]
        %v255 = vld [vmem:[#allocation5 + $0x58] sm:$0xff]
        %v256 = vld [vmem:[#allocation5 + $0x60] sm:$0xff]
        %v257 = vld [vmem:[#allocation5 + $0x68] sm:$0xff]
        %v258 = vld [vmem:[#allocation5 + $0x70] sm:$0xff]
        %v259 = vld [vmem:[#allocation5 + $0x78] sm:$0xff]
        %v276 = vunpack.c.l.b16 %v244
        %v277 = vunpack.c.h.b16 %v244
        %v278 = vunpack.c.l.b16 %v245
        %v279 = vunpack.c.h.b16 %v245
        %v280 = vunpack.c.l.b16 %v246
        %v281 = vunpack.c.h.b16 %v246
        %v282 = vunpack.c.l.b16 %v247
        %v283 = vunpack.c.h.b16 %v247
        %v284 = vunpack.c.l.b16 %v248
        %v285 = vunpack.c.h.b16 %v248
        %v286 = vunpack.c.l.b16 %v249
        %v287 = vunpack.c.h.b16 %v249
        %v288 = vunpack.c.l.b16 %v250
        %v289 = vunpack.c.h.b16 %v250
        %v290 = vunpack.c.l.b16 %v251
        %v291 = vunpack.c.h.b16 %v251
        %v292 = vunpack.c.l.b16 %v252
        %v293 = vunpack.c.h.b16 %v252
        %v294 = vunpack.c.l.b16 %v253
        %v295 = vunpack.c.h.b16 %v253
        %v296 = vunpack.c.l.b16 %v254
        %v297 = vunpack.c.h.b16 %v254
        %v298 = vunpack.c.l.b16 %v255
        %v299 = vunpack.c.h.b16 %v255
        %v300 = vunpack.c.l.b16 %v256
        %v301 = vunpack.c.h.b16 %v256
        %v302 = vunpack.c.l.b16 %v257
        %v303 = vunpack.c.h.b16 %v257
        %v304 = vunpack.c.l.b16 %v258
        %v305 = vunpack.c.h.b16 %v258
        %v306 = vunpack.c.l.b16 %v259
        %v307 = vunpack.c.h.b16 %v259
        %v308 = vpack.c.b16 %v278, %v276
        %v309 = vpack.c.b16 %v279, %v277
        %v310 = vpack.c.b16 %v282, %v280
        %v311 = vpack.c.b16 %v283, %v281
        %v312 = vpack.c.b16 %v286, %v284
        %v313 = vpack.c.b16 %v287, %v285
        %v314 = vpack.c.b16 %v290, %v288
        %v315 = vpack.c.b16 %v291, %v289
        %v316 = vpack.c.b16 %v294, %v292
        %v317 = vpack.c.b16 %v295, %v293
        %v318 = vpack.c.b16 %v298, %v296
        %v319 = vpack.c.b16 %v299, %v297
        %v320 = vpack.c.b16 %v302, %v300
        %v321 = vpack.c.b16 %v303, %v301
        %v322 = vpack.c.b16 %v306, %v304
        %v323 = vpack.c.b16 %v307, %v305
        %340 = vmatpush.bf16.msra.mxu0 %v322
        %341 = vmatpush.bf16.msra.mxu0 %v320
        %342 = vmatpush.bf16.msra.mxu0 %v318
        %343 = vmatpush.bf16.msra.mxu0 %v316
        %344 = vmatpush.bf16.msra.mxu0 %v314
        %345 = vmatpush.bf16.msra.mxu0 %v312
        %346 = vmatpush.bf16.msra.mxu0 %v310
        %347 = vmatpush.bf16.msra.mxu0 %v308
        %348 = vmatmul.bf16.gmra.mxu0 %v236
        %v349 = vpop.f32.mrf.mxu0
        %v350 = vadd.f32 0.0, %v349
        %v351 = vpop.f32.mrf.mxu0
        %v352 = vadd.f32 0.0, %v351
        %353 = vmatmul.bf16.gmra.mxu0 %v237
        %v354 = vpop.f32.mrf.mxu0
        %v355 = vadd.f32 0.0, %v354
        %v356 = vpop.f32.mrf.mxu0
        %v357 = vadd.f32 0.0, %v356
        %358 = vmatmul.bf16.gmra.mxu0 %v238
        %v359 = vpop.f32.mrf.mxu0
        %v360 = vadd.f32 0.0, %v359
        %v361 = vpop.f32.mrf.mxu0
        %v362 = vadd.f32 0.0, %v361
        %363 = vmatmul.bf16.gmra.mxu0 %v239
        %v364 = vpop.f32.mrf.mxu0
        %v365 = vadd.f32 0.0, %v364
        %v366 = vpop.f32.mrf.mxu0
        %v367 = vadd.f32 0.0, %v366
        %368 = vmatmul.bf16.gmra.mxu0 %v240
        %v369 = vpop.f32.mrf.mxu0
        %v370 = vadd.f32 0.0, %v369
        %v371 = vpop.f32.mrf.mxu0
        %v372 = vadd.f32 0.0, %v371
        %373 = vmatmul.bf16.gmra.mxu0 %v241
        %v374 = vpop.f32.mrf.mxu0
        %v375 = vadd.f32 0.0, %v374
        %v376 = vpop.f32.mrf.mxu0
        %v377 = vadd.f32 0.0, %v376
        %378 = vmatmul.bf16.gmra.mxu0 %v242
        %v379 = vpop.f32.mrf.mxu0
        %v380 = vadd.f32 0.0, %v379
        %v381 = vpop.f32.mrf.mxu0
        %v382 = vadd.f32 0.0, %v381
        %383 = vmatmul.bf16.gmra.mxu0 %v243
        %v384 = vpop.f32.mrf.mxu0
        %v385 = vadd.f32 0.0, %v384
        %v386 = vpop.f32.mrf.mxu0
        %v387 = vadd.f32 0.0, %v386
        %388 = vdwg.mxu0
        %389 = vmatpush.bf16.msra.mxu0 %v323
        %390 = vmatpush.bf16.msra.mxu0 %v321
        %391 = vmatpush.bf16.msra.mxu0 %v319
        %392 = vmatpush.bf16.msra.mxu0 %v317
        %393 = vmatpush.bf16.msra.mxu0 %v315
        %394 = vmatpush.bf16.msra.mxu0 %v313
        %395 = vmatpush.bf16.msra.mxu0 %v311
        %396 = vmatpush.bf16.msra.mxu0 %v309
        %397 = vmatmul.bf16.gmra.mxu0 %v236
        %v398 = vpop.f32.mrf.mxu0
        %v399 = vadd.f32 0.0, %v398
        %v400 = vpop.f32.mrf.mxu0
        %v401 = vadd.f32 0.0, %v400
        %402 = vmatmul.bf16.gmra.mxu0 %v237
        %v403 = vpop.f32.mrf.mxu0
        %v404 = vadd.f32 0.0, %v403
        %v405 = vpop.f32.mrf.mxu0
        %v406 = vadd.f32 0.0, %v405
        %407 = vmatmul.bf16.gmra.mxu0 %v238
        %v408 = vpop.f32.mrf.mxu0
        %v409 = vadd.f32 0.0, %v408
        %v410 = vpop.f32.mrf.mxu0
        %v411 = vadd.f32 0.0, %v410
        %412 = vmatmul.bf16.gmra.mxu0 %v239
        %v413 = vpop.f32.mrf.mxu0
        %v414 = vadd.f32 0.0, %v413
        %v415 = vpop.f32.mrf.mxu0
        %v416 = vadd.f32 0.0, %v415
        %417 = vmatmul.bf16.gmra.mxu0 %v240
        %v418 = vpop.f32.mrf.mxu0
        %v419 = vadd.f32 0.0, %v418
        %v420 = vpop.f32.mrf.mxu0
        %v421 = vadd.f32 0.0, %v420
        %422 = vmatmul.bf16.gmra.mxu0 %v241
        %v423 = vpop.f32.mrf.mxu0
        %v424 = vadd.f32 0.0, %v423
        %v425 = vpop.f32.mrf.mxu0
        %v426 = vadd.f32 0.0, %v425
        %427 = vmatmul.bf16.gmra.mxu0 %v242
        %v428 = vpop.f32.mrf.mxu0
        %v429 = vadd.f32 0.0, %v428
        %v430 = vpop.f32.mrf.mxu0
        %v431 = vadd.f32 0.0, %v430
        %432 = vmatmul.bf16.gmra.mxu0 %v243
        %v433 = vpop.f32.mrf.mxu0
        %v434 = vadd.f32 0.0, %v433
        %v435 = vpop.f32.mrf.mxu0
        %v436 = vadd.f32 0.0, %v435
        %437 = vdwg.mxu0
        %v438 = vadd.f32 %v350, %v352
        %v439 = vadd.f32 %v438, %v355
        %v440 = vadd.f32 %v439, %v357
        %v441 = vadd.f32 %v440, %v360
        %v442 = vadd.f32 %v441, %v362
        %v443 = vadd.f32 %v442, %v365
        %v444 = vadd.f32 %v443, %v367
        %v445 = vadd.f32 %v444, %v370
        %v446 = vadd.f32 %v445, %v372
        %v447 = vadd.f32 %v446, %v375
        %v448 = vadd.f32 %v447, %v377
        %v449 = vadd.f32 %v448, %v380
        %v450 = vadd.f32 %v449, %v382
        %v451 = vadd.f32 %v450, %v385
        %v452 = vadd.f32 %v451, %v387
        %v453 = vadd.f32 %v399, %v401
        %v454 = vadd.f32 %v453, %v404
        %v455 = vadd.f32 %v454, %v406
        %v456 = vadd.f32 %v455, %v409
        %v457 = vadd.f32 %v456, %v411
        %v458 = vadd.f32 %v457, %v414
        %v459 = vadd.f32 %v458, %v416
        %v460 = vadd.f32 %v459, %v419
        %v461 = vadd.f32 %v460, %v421
        %v462 = vadd.f32 %v461, %v424
        %v463 = vadd.f32 %v462, %v426
        %v464 = vadd.f32 %v463, %v429
        %v465 = vadd.f32 %v464, %v431
        %v466 = vadd.f32 %v465, %v434
        %v467 = vadd.f32 %v466, %v436
        %468 = vst [vmem:[%s211] sm:$0xff] %v452
        %469 = vst [vmem:[%s211 + $0x8] sm:$0xff] %v467
        %v470 = vmul.f32 %v350, %v350
        %v471 = vmul.f32 %v399, %v399
        %v472 = vmul.f32 %v352, %v352
        %v473 = vmul.f32 %v401, %v401
        %v474 = vmul.f32 %v355, %v355
        %v475 = vmul.f32 %v404, %v404
        %v476 = vmul.f32 %v357, %v357
        %v477 = vmul.f32 %v406, %v406
        %v478 = vmul.f32 %v360, %v360
        %v479 = vmul.f32 %v409, %v409
        %v480 = vmul.f32 %v362, %v362
        %v481 = vmul.f32 %v411, %v411
        %v482 = vmul.f32 %v365, %v365
        %v483 = vmul.f32 %v414, %v414
        %v484 = vmul.f32 %v367, %v367
        %v485 = vmul.f32 %v416, %v416
        %v486 = vmul.f32 %v370, %v370
        %v487 = vmul.f32 %v419, %v419
        %v488 = vmul.f32 %v372, %v372
        %v489 = vmul.f32 %v421, %v421
        %v490 = vmul.f32 %v375, %v375
        %v491 = vmul.f32 %v424, %v424
        %v492 = vmul.f32 %v377, %v377
        %v493 = vmul.f32 %v426, %v426
        %v494 = vmul.f32 %v380, %v380
        %v495 = vmul.f32 %v429, %v429
        %v496 = vmul.f32 %v382, %v382
        %v497 = vmul.f32 %v431, %v431
        %v498 = vmul.f32 %v385, %v385
        %v499 = vmul.f32 %v434, %v434
        %v500 = vmul.f32 %v387, %v387
        %v501 = vmul.f32 %v436, %v436
        %v502 = vadd.f32 %v470, %v472
        %v503 = vadd.f32 %v502, %v474
        %v504 = vadd.f32 %v503, %v476
        %v505 = vadd.f32 %v504, %v478
        %v506 = vadd.f32 %v505, %v480
        %v507 = vadd.f32 %v506, %v482
        %v508 = vadd.f32 %v507, %v484
        %v509 = vadd.f32 %v508, %v486
        %v510 = vadd.f32 %v509, %v488
        %v511 = vadd.f32 %v510, %v490
        %v512 = vadd.f32 %v511, %v492
        %v513 = vadd.f32 %v512, %v494
        %v514 = vadd.f32 %v513, %v496
        %v515 = vadd.f32 %v514, %v498
        %v516 = vadd.f32 %v515, %v500
        %v517 = vadd.f32 %v471, %v473
        %v518 = vadd.f32 %v517, %v475
        %v519 = vadd.f32 %v518, %v477
        %v520 = vadd.f32 %v519, %v479
        %v521 = vadd.f32 %v520, %v481
        %v522 = vadd.f32 %v521, %v483
        %v523 = vadd.f32 %v522, %v485
        %v524 = vadd.f32 %v523, %v487
        %v525 = vadd.f32 %v524, %v489
        %v526 = vadd.f32 %v525, %v491
        %v527 = vadd.f32 %v526, %v493
        %v528 = vadd.f32 %v527, %v495
        %v529 = vadd.f32 %v528, %v497
        %v530 = vadd.f32 %v529, %v499
        %v531 = vadd.f32 %v530, %v501
        %532 = vst [vmem:[%s218] sm:$0xff] %v516
        %533 = vst [vmem:[%s218 + $0x8] sm:$0xff] %v531
        %s534 = sand.u32 %s80, 1
        %s535 = scalar_lea.sflag [#allocation4], %s534
        %s536 = sand.u32 %s80, 1
        %s537 = smul.addr %s536, 16
        %s538 = scalar_lea.vmem [#allocation7], %s537
        %s539 = sand.u32 %s106, 1
        %s540 = scalar_lea.sflag [#allocation9], %s539
        %s541 = sand.u32 %s106, 1
        %s542 = smul.addr %s541, 16
        %s543 = scalar_lea.vmem [#allocation8], %s542
        // Predicated region
        $region37: #{tpu_custom_call.1} parent=27 // pred_check
          %p544 = pneg %p90
        $region38: #{tpu_custom_call.1} parent=27 // pred_check_branch
          %546 = sbr.rel (%p544) target = $region40
        $region39: #{tpu_custom_call.1} parent=27 // pred_region
          %548 = vsyncadd %s535, 0
          %s549 = smul.addr %s25, 2
          %s550 = smul.addr %s549, 8
          %s551 = scalar_lea.hbm %s2, %s550
          %s553 = sshll.u32 %s538, 4
          %s554 = int_to_ptr.vmem [resolvable:$true] %s553
          %s555 = sshll.u32 %s551, 4
          %s556 = int_to_ptr.hbm [resolvable:$true] %s555
          %558 = dma.vmem_to_hbm [thread:$0]  %s554, 256, %s556, %s535
        $region40: #{tpu_custom_call.1} parent=27 // pred_fallthru
          _
        // Predicated region
        $region41: #{tpu_custom_call.1} parent=27 // pred_check
          %p559 = pneg %p116
        $region42: #{tpu_custom_call.1} parent=27 // pred_check_branch
          %561 = sbr.rel (%p559) target = $region44
        $region43: #{tpu_custom_call.1} parent=27 // pred_region
          %563 = vsyncadd %s540, 0
          %s564 = smul.addr %s25, 2
          %s565 = smul.addr %s564, 8
          %s566 = scalar_lea.hbm %s3, %s565
          %s568 = sshll.u32 %s543, 4
          %s569 = int_to_ptr.vmem [resolvable:$true] %s568
          %s570 = sshll.u32 %s566, 4
          %s571 = int_to_ptr.hbm [resolvable:$true] %s570
          %573 = dma.vmem_to_hbm [thread:$0]  %s569, 256, %s571, %s540
        $region44: #{tpu_custom_call.1} parent=27 // pred_fallthru
          _
      $region28: #{tpu_custom_call.1} parent=5 // pred_fallthru
        _
      %p574 = scmp.le.s32.totalorder 2, %s20
      // Predicated region
      $region45: #{tpu_custom_call.1} parent=5 // pred_check
        %p575 = pneg %p574
      $region46: #{tpu_custom_call.1} parent=5 // pred_check_branch
        %577 = sbr.rel (%p575) target = $region48
      $region47: #{tpu_custom_call.1} parent=5 // pred_region
        %s578 = ssub.s32 %s20, 2
        // Predicated region
        $region49: #{tpu_custom_call.1} parent=47 // pred_check
          %p579 = pneg %p96
        $region50: #{tpu_custom_call.1} parent=47 // pred_check_branch
          %581 = sbr.rel (%p579) target = $region52
        $region51: #{tpu_custom_call.1} parent=47 // pred_region
          %s582 = sand.u32 %s81, 1
          %s583 = scalar_lea.sflag [#allocation4], %s582
          %s584 = sand.u32 %s81, 1
          %s585 = smul.addr %s584, 16
          %s586 = scalar_lea.vmem [#allocation7], %s585
          %588 = dma.done %s583, 256
        $region52: #{tpu_custom_call.1} parent=47 // pred_fallthru
          _
        // Predicated region
        $region53: #{tpu_custom_call.1} parent=47 // pred_check
          %p589 = pneg %p122
        $region54: #{tpu_custom_call.1} parent=47 // pred_check_branch
          %591 = sbr.rel (%p589) target = $region56
        $region55: #{tpu_custom_call.1} parent=47 // pred_region
          %s592 = sand.u32 %s107, 1
          %s593 = scalar_lea.sflag [#allocation9], %s592
          %s594 = sand.u32 %s107, 1
          %s595 = smul.addr %s594, 16
          %s596 = scalar_lea.vmem [#allocation8], %s595
          %598 = dma.done %s593, 256
        $region56: #{tpu_custom_call.1} parent=47 // pred_fallthru
          _
      $region48: #{tpu_custom_call.1} parent=5 // pred_fallthru
        _
    $region6: #{tpu_custom_call.1} parent=1 // loop_footer
      %s24 = sadd.s32 1, %s20
    $region7: #{tpu_custom_call.1} parent=1 // loop_footer_branch
      %19 = sbr.rel target = $region3
    $region8: #{tpu_custom_call.1} parent=1 // loop_exit
      _
    %599 = vsyncpa [#allocation3], 1
    %s600 = scalar_lea.sflag [#allocation3], 1
    %601 = vsyncpa %s600, 1
    %602 = vsyncpa [#allocation6], 1
    %603 = vsyncpa [#allocation4], 1
    %s604 = scalar_lea.sflag [#allocation4], 1
    %605 = vsyncpa %s604, 1
    %606 = vsyncpa [#allocation9], 1
    %s607 = scalar_lea.sflag [#allocation9], 1
    %608 = vsyncpa %s607, 1

</llo_original>
